<compile_context>
chip_gen: v7x
topology: tpu7x:2x2x1
jax: 0.10.0
libtpu: 0.0.40
codegen_flags: <defaults>
</compile_context>

<pallas_src>
import numpy as np
import jax
import jax.numpy as jnp
from jax.experimental import pallas as pl
from jax.experimental.pallas import tpu as pltpu

NEG_SLOPE = 0.01  # nn.LeakyReLU default negative_slope


def _round_up(n, m):
    return ((n + m - 1) // m) * m


# ---------------------------------------------------------------------------
# Fused kernel: full MLP in one invocation, parameters sliced from one slab.
# ---------------------------------------------------------------------------
def make_critic_kernel(layout, head):
    """layout: tuple of (row_w, row_b, d_in, d_out) per hidden layer.
       head:   (row_head, d_head) for the bias-free output row."""
    r_head, d_head = head

    def kernel(x_ref, slab_ref, o_ref):
        h = x_ref[...]                                        # (B, latent_dim)
        for (r_w, r_b, d_in, d_out) in layout:                # statically unrolled
            w = slab_ref[r_w:r_w + d_in, 0:d_out]             # (d_in, d_out)
            b = slab_ref[r_b:r_b + 1, 0:d_out]                # (1, d_out)
            h = jnp.dot(h, w, preferred_element_type=jnp.float32,
                        precision=jax.lax.Precision.HIGHEST) + b
            h = jnp.where(h > 0, h, NEG_SLOPE * h)            # LeakyReLU
        # Final Linear (bias=False, out_features=1): VPU multiply + lane
        # reduction instead of an N=1 MXU matmul.
        w_row = slab_ref[r_head:r_head + 1, 0:d_head]         # (1, d_head)
        o_ref[...] = jnp.sum(h * w_row, axis=-1, keepdims=True)

    return kernel


# ---------------------------------------------------------------------------
# Wrapper
# ---------------------------------------------------------------------------
def critic_forward(x, params, *, block_b=512):
    """x: (B, latent_dim) f32  ->  (B, 1) f32 critic score."""
    B, d_in = x.shape
    slab = params["slab"]
    kernel = make_critic_kernel(params["layout"], params["head"])
    vmem = pl.BlockSpec(memory_space=pltpu.MemorySpace.VMEM)

    if B <= block_b:
        # Small batch: single un-gridded call, everything resident in VMEM,
        # exactly one DMA per operand (x, slab) and one for the output.
        return pl.pallas_call(
            kernel,
            out_shape=jax.ShapeDtypeStruct((B, 1), jnp.float32),
            in_specs=[vmem, vmem],
            out_specs=vmem,
        )(x, slab)

    # Large batch: tile rows over a parallel grid (megacore on v7x, bounded
    # VMEM per step). Parameter slab uses a constant index_map -> resident.
    bb = block_b
    B_pad = _round_up(B, bb)
    if B_pad != B:
        x = jnp.pad(x, ((0, B_pad - B), (0, 0)))
    out = pl.pallas_call(
        kernel,
        grid=(B_pad // bb,),
        out_shape=jax.ShapeDtypeStruct((B_pad, 1), jnp.float32),
        in_specs=[pl.BlockSpec((bb, d_in), lambda i: (i, 0)),
                  pl.BlockSpec(slab.shape, lambda i: (0, 0))],
        out_specs=pl.BlockSpec((bb, 1), lambda i: (i, 0)),
        compiler_params=pltpu.CompilerParams(
            dimension_semantics=("parallel",)),
    )(x, slab)
    # TODO(synk): for very large B a lane-dense (G, bb) output layout would
    # avoid masked last-dim-1 stores; negligible at the sizes exercised here.
    return out[:B]


# ---------------------------------------------------------------------------
# Pure-JAX reference (fp32-parity matmuls) for numerical check
# ---------------------------------------------------------------------------
def ref_forward(x, params):
    h = x
    for w_t, b in params["hidden"]:
        h = jnp.dot(h, w_t, precision=jax.lax.Precision.HIGHEST) + b
        h = jnp.where(h > 0, h, NEG_SLOPE * h)
    return jnp.dot(h, params["out_w_t"], precision=jax.lax.Precision.HIGHEST)


# ---------------------------------------------------------------------------
# Deterministic parameters (PyTorch-style Linear init) packed into one slab.
#   - weights stored pre-transposed (in, out), biases as (1, out)
#   - every segment starts on an 8-row (sublane) boundary, lane dim padded to 128
# ---------------------------------------------------------------------------
def make_params(key, latent_dim, hidden_neurons):
    dims = [latent_dim] + list(hidden_neurons)
    n_hidden = len(dims) - 1
    keys = jax.random.split(key, n_hidden + 1)

    hidden = []
    for i in range(n_hidden):
        d_i, d_o = dims[i], dims[i + 1]
        kw, kb = jax.random.split(keys[i])
        bound = 1.0 / np.sqrt(d_i)
        w = jax.random.uniform(kw, (d_o, d_i), jnp.float32, -bound, bound)
        b = jax.random.uniform(kb, (d_o,), jnp.float32, -bound, bound)
        hidden.append((w.T, b.reshape(1, d_o)))               # (in,out), (1,out)

    d_head = dims[-1]
    bound = 1.0 / np.sqrt(d_head)
    w_out_row = jax.random.uniform(keys[-1], (1, d_head), jnp.float32,
                                   -bound, bound)             # (1, d_head)

    # --- pack into one (R, lane) slab -------------------------------------
    lane = _round_up(max(list(dims[1:]) + [d_head]), 128)
    layout, blocks = [], []
    row = 0
    for (w_t, b) in hidden:
        d_i, d_o = w_t.shape
        r_w = row
        row += _round_up(d_i, 8)
        r_b = row
        row += 8
        layout.append((r_w, r_b, d_i, d_o))
        blocks.append((r_w, np.asarray(w_t)))
        blocks.append((r_b, np.asarray(b)))
    r_head = row
    row += 8
    blocks.append((r_head, np.asarray(w_out_row)))
    R = _round_up(row, 8)

    slab = np.zeros((R, lane), np.float32)
    for r0, arr in blocks:
        slab[r0:r0 + arr.shape[0], 0:arr.shape[1]] = arr

    return {
        "slab": jnp.asarray(slab),
        "layout": tuple(layout),
        "head": (r_head, d_head),
        # unpacked copies kept only for the reference implementation
        "hidden": hidden,
        "out_w_t": w_out_row.T,                               # (d_head, 1)
    }


if __name__ == "__main__":
    latent_dim = 32
    hidden_neurons = [64, 32]

    key = jax.random.PRNGKey(0)
    kp, kx1, kx2 = jax.random.split(key, 3)
    params = make_params(kp, latent_dim, hidden_neurons)

    # --- small batch: un-gridded single-call path --------------------------
    x_small = jax.random.normal(kx1, (8, latent_dim), jnp.float32)
    out_small = jax.block_until_ready(critic_forward(x_small, params))
    ref_small = jax.block_until_ready(ref_forward(x_small, params))
    assert out_small.shape == (8, 1)
    np.testing.assert_allclose(np.asarray(out_small), np.asarray(ref_small),
                               rtol=1e-4, atol=1e-4)

    # --- larger batch: row-tiled "parallel" grid path ----------------------
    x_big = jax.random.normal(kx2, (256, latent_dim), jnp.float32)
    out_big = jax.block_until_ready(critic_forward(x_big, params, block_b=128))
    ref_big = jax.block_until_ready(ref_forward(x_big, params))
    assert out_big.shape == (256, 1)
    np.testing.assert_allclose(np.asarray(out_big), np.asarray(ref_big),
                               rtol=1e-4, atol=1e-4)

    print("KERNEL_OK")
</pallas_src>

<mosaic_0001>
module attributes {stable_mosaic.version = 11 : i64} {
  func.func @kernel(%arg0: memref<8x32xf32, #tpu.memory_space<vmem>>, %arg1: memref<120x128xf32, #tpu.memory_space<vmem>>, %arg2: memref<8x1xf32, #tpu.memory_space<vmem>>) attributes {dimension_semantics = [], scalar_prefetch = 0 : i64, scratch_operands = 0 : i64, tpu.core_type = #tpu.core_type<tc>} {
    %c0 = arith.constant 0 : index
    %c0_0 = arith.constant 0 : index
    %0 = vector.load %arg0[%c0, %c0_0] : memref<8x32xf32, #tpu.memory_space<vmem>>, vector<8x32xf32>
    %c0_1 = arith.constant 0 : index
    %c0_2 = arith.constant 0 : index
    %1 = vector.load %arg1[%c0_1, %c0_2] : memref<120x128xf32, #tpu.memory_space<vmem>>, vector<32x64xf32>
    %c32 = arith.constant 32 : index
    %c0_3 = arith.constant 0 : index
    %2 = vector.load %arg1[%c32, %c0_3] : memref<120x128xf32, #tpu.memory_space<vmem>>, vector<1x64xf32>
    %cst = arith.constant dense<0.000000e+00> : vector<8x64xf32>
    %3 = tpu.matmul %0, %1, %cst {dimension_numbers = #tpu.dot_dimension_numbers<[1], [0], [0], [1], [0, 0, 1, 1], [], []>, precision = #tpu.contract_precision<fp32>} : vector<8x32xf32>, vector<32x64xf32>, vector<8x64xf32> -> vector<8x64xf32>
    %4 = vector.broadcast %2 : vector<1x64xf32> to vector<8x64xf32>
    %5 = arith.addf %3, %4 : vector<8x64xf32>
    %cst_4 = arith.constant 0.000000e+00 : f32
    %6 = vector.broadcast %cst_4 : f32 to vector<8x64xf32>
    %7 = arith.cmpf ogt, %5, %6 : vector<8x64xf32>
    %cst_5 = arith.constant 0.00999999977 : f32
    %8 = vector.broadcast %cst_5 : f32 to vector<8x64xf32>
    %9 = arith.mulf %8, %5 : vector<8x64xf32>
    %10 = arith.select %7, %5, %9 : vector<8x64xi1>, vector<8x64xf32>
    %c40 = arith.constant 40 : index
    %c0_6 = arith.constant 0 : index
    %11 = vector.load %arg1[%c40, %c0_6] : memref<120x128xf32, #tpu.memory_space<vmem>>, vector<64x32xf32>
    %c104 = arith.constant 104 : index
    %c0_7 = arith.constant 0 : index
    %12 = vector.load %arg1[%c104, %c0_7] : memref<120x128xf32, #tpu.memory_space<vmem>>, vector<1x32xf32>
    %cst_8 = arith.constant dense<0.000000e+00> : vector<8x32xf32>
    %13 = tpu.matmul %10, %11, %cst_8 {dimension_numbers = #tpu.dot_dimension_numbers<[1], [0], [0], [1], [0, 0, 1, 1], [], []>, precision = #tpu.contract_precision<fp32>} : vector<8x64xf32>, vector<64x32xf32>, vector<8x32xf32> -> vector<8x32xf32>
    %14 = vector.broadcast %12 : vector<1x32xf32> to vector<8x32xf32>
    %15 = arith.addf %13, %14 : vector<8x32xf32>
    %cst_9 = arith.constant 0.000000e+00 : f32
    %16 = vector.broadcast %cst_9 : f32 to vector<8x32xf32>
    %17 = arith.cmpf ogt, %15, %16 : vector<8x32xf32>
    %cst_10 = arith.constant 0.00999999977 : f32
    %18 = vector.broadcast %cst_10 : f32 to vector<8x32xf32>
    %19 = arith.mulf %18, %15 : vector<8x32xf32>
    %20 = arith.select %17, %15, %19 : vector<8x32xi1>, vector<8x32xf32>
    %c112 = arith.constant 112 : index
    %c0_11 = arith.constant 0 : index
    %21 = vector.load %arg1[%c112, %c0_11] : memref<120x128xf32, #tpu.memory_space<vmem>>, vector<1x32xf32>
    %22 = vector.broadcast %21 : vector<1x32xf32> to vector<8x32xf32>
    %23 = arith.mulf %20, %22 : vector<8x32xf32>
    %cst_12 = arith.constant dense<0.000000e+00> : vector<8xf32>
    %24 = vector.multi_reduction <add>, %23, %cst_12 [1] : vector<8x32xf32> to vector<8xf32>
    %25 = vector.shape_cast %24 : vector<8xf32> to vector<8x1xf32>
    %c0_13 = arith.constant 0 : index
    %c0_14 = arith.constant 0 : index
    %26 = vector.load %arg2[%c0_13, %c0_14] : memref<8x1xf32, #tpu.memory_space<vmem>>, vector<8x1xf32>
    tpu.vector_store %arg2[%c0_13, %c0_14], %25 {strides = array<i32>} : memref<8x1xf32, #tpu.memory_space<vmem>>, vector<8x1xf32>,
    return
  }
}

</mosaic_0001>

<llo_original>
// kernel: tpu_custom_call.1
$region0: #{tpu_custom_call.1}
  #allocation0 [shape = 'u32[]', space=smem, size = 0x4, offset = 0x4, fixed_abs, tag = 'smem constant byte address 0x4 - core index']
  #allocation1 [shape = 'u32[144,128]{1,0:T(1,128)}', space=vmem, size = 0x12000, scoped, tag = 'internal scratch']
  %s0 = inlined_call_operand.hbm [shape: f32[8,32], index: 0, kind: input, shape index: {}]
  %s1 = inlined_call_operand.hbm [shape: f32[120,128], index: 1, kind: input, shape index: {}]
  %s2 = inlined_call_operand.vmem [shape: f32[8,1], index: 2, kind: output, shape index: {}]
  %s3 = sld [smem:[#allocation0]]
  $region26: #{tpu_custom_call.1} parent=0
    _
  %s5 = ssub.s32 1, %s3
  %s6 = scalar_select 0, %s5, %s3
  $region1: #{tpu_custom_call.1} parent=0
    #allocation2 [shape = 'u8[4096]{0}', space=vmem, size = 0x1000, scoped, tag = 'input window, operand 0, single buffered']
    #allocation3 [shape = 's32[1]{0}', space=sflag, size = 0x4, scoped, tag = 'scoped memory for tpu_custom_call.1']
    #allocation4 [shape = 'u8[61440]{0}', space=vmem, size = 0xf000, scoped, tag = 'input window, operand 1, single buffered']
    #allocation5 [shape = 's32[1]{0}', space=sflag, size = 0x4, scoped, tag = 'scoped memory for tpu_custom_call.1']
    %7 = vsyncpa [#allocation3], 0
    %8 = vsyncpa [#allocation5], 0
    // Predicated region
    $region2: #{tpu_custom_call.1} parent=1 // pred_check
      _
    $region3: #{tpu_custom_call.1} parent=1 // pred_check_branch
      %10 = sbr.rel (0) target = $region5
    $region4: #{tpu_custom_call.1} parent=1 // pred_region
      %s12 = ssub.s32 128, 128
      %13 = vsyncadd [#allocation3], %s12
      %s15 = sshll.u32 [#allocation2], 4
      %s16 = int_to_ptr.vmem [resolvable:$true] %s15
      %18 = dma.hbm_to_vmem [thread:$0]  %s0, 128, %s16, [#allocation3]
    $region5: #{tpu_custom_call.1} parent=1 // pred_fallthru
      _
    // Predicated region
    $region6: #{tpu_custom_call.1} parent=1 // pred_check
      _
    $region7: #{tpu_custom_call.1} parent=1 // pred_check_branch
      %20 = sbr.rel (0) target = $region9
    $region8: #{tpu_custom_call.1} parent=1 // pred_region
      %s22 = ssub.s32 1920, 1920
      %23 = vsyncadd [#allocation5], %s22
      %s24 = sshll.u32 [#allocation4], 4
      %s25 = int_to_ptr.vmem [resolvable:$true] %s24
      %30 = dma.hbm_to_vmem [thread:$0]  %s1, 1920, %s25, [#allocation5], 128, 128, 8
    $region9: #{tpu_custom_call.1} parent=1 // pred_fallthru
      _
    // Predicated region
    $region10: #{tpu_custom_call.1} parent=1 // pred_check
      _
    $region11: #{tpu_custom_call.1} parent=1 // pred_check_branch
      %32 = sbr.rel (0) target = $region13
    $region12: #{tpu_custom_call.1} parent=1 // pred_region
      %33 = dma.done [#allocation3], 128
    $region13: #{tpu_custom_call.1} parent=1 // pred_fallthru
      _
    // Predicated region
    $region14: #{tpu_custom_call.1} parent=1 // pred_check
      _
    $region15: #{tpu_custom_call.1} parent=1 // pred_check_branch
      %35 = sbr.rel (0) target = $region17
    $region16: #{tpu_custom_call.1} parent=1 // pred_region
      %36 = dma.done [#allocation5], 1920
    $region17: #{tpu_custom_call.1} parent=1 // pred_fallthru
      _
    %v37 = vld [vmem:[#allocation2] sm:$0xff]
    %v38 = vld [vmem:[#allocation4] sm:$0xff]
    %v39 = vld [vmem:[#allocation4 + $0x8] sm:$0xff]
    %v40 = vld [vmem:[#allocation4 + $0x10] sm:$0xff]
    %v41 = vld [vmem:[#allocation4 + $0x18] sm:$0xff]
    %v42 = vld [vmem:[#allocation4 + $0x20] sm:$0x1]
    %v43 = vlaneseq
    %v44 = vshrl.u32 %v43, 7
    %v45 = vsub.s32 0, %v44
    %v46 = vrot.slane %v42, %v45
    %vm47 = vcmask 261120
    %v49 = vsel %vm47, %v37, 0
    %51 = vmatprep.subr.mxu0 0.0
    %v52 = vand.u32 %v38, 4294901760
    %53 = vmatpush1.msra.mxu0 %v52
    %54 = vmatprep.subr.mxu0 0.0
    %v55 = vand.u32 %v39, 4294901760
    %56 = vmatpush1.msra.mxu0 %v55
    %57 = vmatprep.subr.mxu0 0.0
    %v58 = vand.u32 %v40, 4294901760
    %59 = vmatpush1.msra.mxu0 %v58
    %60 = vmatprep.subr.mxu0 0.0
    %v61 = vand.u32 %v41, 4294901760
    %62 = vmatpush1.msra.mxu0 %v61
    %63 = vmatprep.subr.mxu0 0.0
    %64 = vmatpush1.msra.mxu0 0.0
    %65 = vmatprep.subr.mxu0 0.0
    %66 = vmatpush1.msra.mxu0 0.0
    %67 = vmatprep.subr.mxu0 0.0
    %68 = vmatpush1.msra.mxu0 0.0
    %69 = vmatprep.subr.mxu0 0.0
    %70 = vmatpush1.msra.mxu0 0.0
    %71 = vmatprep.subr.mxu0 0.0
    %72 = vmatpush1.msra.mxu0 0.0
    %73 = vmatprep.subr.mxu0 0.0
    %74 = vmatpush1.msra.mxu0 0.0
    %75 = vmatprep.subr.mxu0 0.0
    %76 = vmatpush1.msra.mxu0 0.0
    %77 = vmatprep.subr.mxu0 0.0
    %78 = vmatpush1.msra.mxu0 0.0
    %79 = vmatprep.subr.mxu0 0.0
    %80 = vmatpush1.msra.mxu0 0.0
    %81 = vmatprep.subr.mxu0 0.0
    %82 = vmatpush1.msra.mxu0 0.0
    %83 = vmatprep.subr.mxu0 0.0
    %84 = vmatpush1.msra.mxu0 0.0
    %85 = vmatprep.subr.mxu0 0.0
    %86 = vmatpush1.msra.mxu0 0.0
    %87 = vmatprep.subr.mxu0 0.0
    %88 = vmatpush1.msra.mxu0 0.0
    %89 = vmatprep.subr.mxu0 0.0
    %90 = vmatpush1.msra.mxu0 0.0
    %91 = vmatprep.subr.mxu0 0.0
    %92 = vmatpush1.msra.mxu0 0.0
    %93 = vmatprep.subr.mxu0 0.0
    %94 = vmatpush1.msra.mxu0 0.0
    %95 = vmatprep.subr.mxu0 0.0
    %96 = vmatpush1.msra.mxu0 0.0
    %97 = vmatprep.subr.mxu0 0.0
    %98 = vmatpush1.msra.mxu0 0.0
    %99 = vmatprep.subr.mxu0 0.0
    %100 = vmatpush1.msra.mxu0 0.0
    %101 = vmatprep.subr.mxu0 0.0
    %102 = vmatpush1.msra.mxu0 0.0
    %103 = vmatprep.subr.mxu0 0.0
    %104 = vmatpush1.msra.mxu0 0.0
    %105 = vmatprep.subr.mxu0 0.0
    %106 = vmatpush1.msra.mxu0 0.0
    %107 = vmatprep.subr.mxu0 0.0
    %108 = vmatpush1.msra.mxu0 0.0
    %109 = vmatprep.subr.mxu0 0.0
    %110 = vmatpush1.msra.mxu0 0.0
    %111 = vmatprep.subr.mxu0 0.0
    %112 = vmatpush1.msra.mxu0 0.0
    %113 = vmatprep.subr.mxu0 0.0
    %114 = vmatpush1.msra.mxu0 0.0
    %115 = vmatprep.subr.mxu0 0.0
    %116 = vmatpush1.msra.mxu0 0.0
    %117 = vmatprep.subr.mxu0 0.0
    %118 = vmatpush1.msra.mxu0 0.0
    %119 = vmatprep.mubr.f32.mxu0 0.0
    %v120 = vand.u32 %v49, 4294901760
    %v121 = vsub.f32 %v49, %v120
    %v122 = vand.u32 %v121, 4294901760
    %v123 = vsub.f32 %v121, %v122
    %v124 = vand.u32 %v123, 4294901760
    %125 = vmatmul.mubr.f32.gmra.mrb[0].mxu0 %v124
    %v126 = vpop.f32.mrb[0].mxu0
    %v127 = vadd.f32 %v46, %v126
    %v128 = vpop.f32.mrb[0].mxu0
    %129 = vdwg.mxu0
    %130 = vmatprep.subr.mxu0 0.0
    %v131 = vand.u32 %v38, 4294901760
    %v132 = vsub.f32 %v38, %v131
    %v133 = vand.u32 %v132, 4294901760
    %v134 = vsub.f32 %v132, %v133
    %v135 = vand.u32 %v134, 4294901760
    %136 = vmatpush1.msra.mxu0 %v135
    %137 = vmatprep.subr.mxu0 0.0
    %v138 = vand.u32 %v39, 4294901760
    %v139 = vsub.f32 %v39, %v138
    %v140 = vand.u32 %v139, 4294901760
    %v141 = vsub.f32 %v139, %v140
    %v142 = vand.u32 %v141, 4294901760
    %143 = vmatpush1.msra.mxu0 %v142
    %144 = vmatprep.subr.mxu0 0.0
    %v145 = vand.u32 %v40, 4294901760
    %v146 = vsub.f32 %v40, %v145
    %v147 = vand.u32 %v146, 4294901760
    %v148 = vsub.f32 %v146, %v147
    %v149 = vand.u32 %v148, 4294901760
    %150 = vmatpush1.msra.mxu0 %v149
    %151 = vmatprep.subr.mxu0 0.0
    %v152 = vand.u32 %v41, 4294901760
    %v153 = vsub.f32 %v41, %v152
    %v154 = vand.u32 %v153, 4294901760
    %v155 = vsub.f32 %v153, %v154
    %v156 = vand.u32 %v155, 4294901760
    %157 = vmatpush1.msra.mxu0 %v156
    %158 = vmatprep.subr.mxu0 0.0
    %159 = vmatpush1.msra.mxu0 0.0
    %160 = vmatprep.subr.mxu0 0.0
    %161 = vmatpush1.msra.mxu0 0.0
    %162 = vmatprep.subr.mxu0 0.0
    %163 = vmatpush1.msra.mxu0 0.0
    %164 = vmatprep.subr.mxu0 0.0
    %165 = vmatpush1.msra.mxu0 0.0
    %166 = vmatprep.subr.mxu0 0.0
    %167 = vmatpush1.msra.mxu0 0.0
    %168 = vmatprep.subr.mxu0 0.0
    %169 = vmatpush1.msra.mxu0 0.0
    %170 = vmatprep.subr.mxu0 0.0
    %171 = vmatpush1.msra.mxu0 0.0
    %172 = vmatprep.subr.mxu0 0.0
    %173 = vmatpush1.msra.mxu0 0.0
    %174 = vmatprep.subr.mxu0 0.0
    %175 = vmatpush1.msra.mxu0 0.0
    %176 = vmatprep.subr.mxu0 0.0
    %177 = vmatpush1.msra.mxu0 0.0
    %178 = vmatprep.subr.mxu0 0.0
    %179 = vmatpush1.msra.mxu0 0.0
    %180 = vmatprep.subr.mxu0 0.0
    %181 = vmatpush1.msra.mxu0 0.0
    %182 = vmatprep.subr.mxu0 0.0
    %183 = vmatpush1.msra.mxu0 0.0
    %184 = vmatprep.subr.mxu0 0.0
    %185 = vmatpush1.msra.mxu0 0.0
    %186 = vmatprep.subr.mxu0 0.0
    %187 = vmatpush1.msra.mxu0 0.0
    %188 = vmatprep.subr.mxu0 0.0
    %189 = vmatpush1.msra.mxu0 0.0
    %190 = vmatprep.subr.mxu0 0.0
    %191 = vmatpush1.msra.mxu0 0.0
    %192 = vmatprep.subr.mxu0 0.0
    %193 = vmatpush1.msra.mxu0 0.0
    %194 = vmatprep.subr.mxu0 0.0
    %195 = vmatpush1.msra.mxu0 0.0
    %196 = vmatprep.subr.mxu0 0.0
    %197 = vmatpush1.msra.mxu0 0.0
    %198 = vmatprep.subr.mxu0 0.0
    %199 = vmatpush1.msra.mxu0 0.0
    %200 = vmatprep.subr.mxu0 0.0
    %201 = vmatpush1.msra.mxu0 0.0
    %202 = vmatprep.subr.mxu0 0.0
    %203 = vmatpush1.msra.mxu0 0.0
    %204 = vmatprep.subr.mxu0 0.0
    %205 = vmatpush1.msra.mxu0 0.0
    %206 = vmatprep.subr.mxu0 0.0
    %207 = vmatpush1.msra.mxu0 0.0
    %208 = vmatprep.subr.mxu0 0.0
    %209 = vmatpush1.msra.mxu0 0.0
    %210 = vmatprep.subr.mxu0 0.0
    %211 = vmatpush1.msra.mxu0 0.0
    %212 = vmatprep.subr.mxu0 0.0
    %213 = vmatpush1.msra.mxu0 0.0
    %214 = vmatprep.mubr.f32.mxu0 0.0
    %v215 = vand.u32 %v49, 4294901760
    %216 = vmatmul.mubr.f32.gmra.mrb[0].mxu0 %v215
    %v217 = vpop.f32.mrb[0].mxu0
    %v218 = vadd.f32 %v127, %v217
    %v219 = vpop.f32.mrb[0].mxu0
    %220 = vdwg.mxu0
    %221 = vmatprep.subr.mxu0 0.0
    %v222 = vand.u32 %v38, 4294901760
    %v223 = vsub.f32 %v38, %v222
    %224 = vmatpush1.msra.mxu0 %v223
    %225 = vmatprep.subr.mxu0 0.0
    %v226 = vand.u32 %v39, 4294901760
    %v227 = vsub.f32 %v39, %v226
    %228 = vmatpush1.msra.mxu0 %v227
    %229 = vmatprep.subr.mxu0 0.0
    %v230 = vand.u32 %v40, 4294901760
    %v231 = vsub.f32 %v40, %v230
    %232 = vmatpush1.msra.mxu0 %v231
    %233 = vmatprep.subr.mxu0 0.0
    %v234 = vand.u32 %v41, 4294901760
    %v235 = vsub.f32 %v41, %v234
    %236 = vmatpush1.msra.mxu0 %v235
    %237 = vmatprep.subr.mxu0 0.0
    %238 = vmatpush1.msra.mxu0 0.0
    %239 = vmatprep.subr.mxu0 0.0
    %240 = vmatpush1.msra.mxu0 0.0
    %241 = vmatprep.subr.mxu0 0.0
    %242 = vmatpush1.msra.mxu0 0.0
    %243 = vmatprep.subr.mxu0 0.0
    %244 = vmatpush1.msra.mxu0 0.0
    %245 = vmatprep.subr.mxu0 0.0
    %246 = vmatpush1.msra.mxu0 0.0
    %247 = vmatprep.subr.mxu0 0.0
    %248 = vmatpush1.msra.mxu0 0.0
    %249 = vmatprep.subr.mxu0 0.0
    %250 = vmatpush1.msra.mxu0 0.0
    %251 = vmatprep.subr.mxu0 0.0
    %252 = vmatpush1.msra.mxu0 0.0
    %253 = vmatprep.subr.mxu0 0.0
    %254 = vmatpush1.msra.mxu0 0.0
    %255 = vmatprep.subr.mxu0 0.0
    %256 = vmatpush1.msra.mxu0 0.0
    %257 = vmatprep.subr.mxu0 0.0
    %258 = vmatpush1.msra.mxu0 0.0
    %259 = vmatprep.subr.mxu0 0.0
    %260 = vmatpush1.msra.mxu0 0.0
    %261 = vmatprep.subr.mxu0 0.0
    %262 = vmatpush1.msra.mxu0 0.0
    %263 = vmatprep.subr.mxu0 0.0
    %264 = vmatpush1.msra.mxu0 0.0
    %265 = vmatprep.subr.mxu0 0.0
    %266 = vmatpush1.msra.mxu0 0.0
    %267 = vmatprep.subr.mxu0 0.0
    %268 = vmatpush1.msra.mxu0 0.0
    %269 = vmatprep.subr.mxu0 0.0
    %270 = vmatpush1.msra.mxu0 0.0
    %271 = vmatprep.subr.mxu0 0.0
    %272 = vmatpush1.msra.mxu0 0.0
    %273 = vmatprep.subr.mxu0 0.0
    %274 = vmatpush1.msra.mxu0 0.0
    %275 = vmatprep.subr.mxu0 0.0
    %276 = vmatpush1.msra.mxu0 0.0
    %277 = vmatprep.subr.mxu0 0.0
    %278 = vmatpush1.msra.mxu0 0.0
    %279 = vmatprep.subr.mxu0 0.0
    %280 = vmatpush1.msra.mxu0 0.0
    %281 = vmatprep.subr.mxu0 0.0
    %282 = vmatpush1.msra.mxu0 0.0
    %283 = vmatprep.subr.mxu0 0.0
    %284 = vmatpush1.msra.mxu0 0.0
    %285 = vmatprep.subr.mxu0 0.0
    %286 = vmatpush1.msra.mxu0 0.0
    %287 = vmatprep.subr.mxu0 0.0
    %288 = vmatpush1.msra.mxu0 0.0
    %289 = vmatprep.subr.mxu0 0.0
    %290 = vmatpush1.msra.mxu0 0.0
    %291 = vmatprep.subr.mxu0 0.0
    %292 = vmatpush1.msra.mxu0 0.0
    %293 = vmatprep.mubr.f32.mxu0 0.0
    %v294 = vand.u32 %v49, 4294901760
    %v295 = vsub.f32 %v49, %v294
    %296 = vmatmul.mubr.f32.gmra.mrb[0].mxu0 %v295
    %v297 = vpop.f32.mrb[0].mxu0
    %v298 = vadd.f32 %v218, %v297
    %v299 = vpop.f32.mrb[0].mxu0
    %300 = vdwg.mxu0
    %301 = vmatprep.subr.mxu0 0.0
    %v302 = vand.u32 %v38, 4294901760
    %303 = vmatpush1.msra.mxu0 %v302
    %304 = vmatprep.subr.mxu0 0.0
    %v305 = vand.u32 %v39, 4294901760
    %306 = vmatpush1.msra.mxu0 %v305
    %307 = vmatprep.subr.mxu0 0.0
    %v308 = vand.u32 %v40, 4294901760
    %309 = vmatpush1.msra.mxu0 %v308
    %310 = vmatprep.subr.mxu0 0.0
    %v311 = vand.u32 %v41, 4294901760
    %312 = vmatpush1.msra.mxu0 %v311
    %313 = vmatprep.subr.mxu0 0.0
    %314 = vmatpush1.msra.mxu0 0.0
    %315 = vmatprep.subr.mxu0 0.0
    %316 = vmatpush1.msra.mxu0 0.0
    %317 = vmatprep.subr.mxu0 0.0
    %318 = vmatpush1.msra.mxu0 0.0
    %319 = vmatprep.subr.mxu0 0.0
    %320 = vmatpush1.msra.mxu0 0.0
    %321 = vmatprep.subr.mxu0 0.0
    %322 = vmatpush1.msra.mxu0 0.0
    %323 = vmatprep.subr.mxu0 0.0
    %324 = vmatpush1.msra.mxu0 0.0
    %325 = vmatprep.subr.mxu0 0.0
    %326 = vmatpush1.msra.mxu0 0.0
    %327 = vmatprep.subr.mxu0 0.0
    %328 = vmatpush1.msra.mxu0 0.0
    %329 = vmatprep.subr.mxu0 0.0
    %330 = vmatpush1.msra.mxu0 0.0
    %331 = vmatprep.subr.mxu0 0.0
    %332 = vmatpush1.msra.mxu0 0.0
    %333 = vmatprep.subr.mxu0 0.0
    %334 = vmatpush1.msra.mxu0 0.0
    %335 = vmatprep.subr.mxu0 0.0
    %336 = vmatpush1.msra.mxu0 0.0
    %337 = vmatprep.subr.mxu0 0.0
    %338 = vmatpush1.msra.mxu0 0.0
    %339 = vmatprep.subr.mxu0 0.0
    %340 = vmatpush1.msra.mxu0 0.0
    %341 = vmatprep.subr.mxu0 0.0
    %342 = vmatpush1.msra.mxu0 0.0
    %343 = vmatprep.subr.mxu0 0.0
    %344 = vmatpush1.msra.mxu0 0.0
    %345 = vmatprep.subr.mxu0 0.0
    %346 = vmatpush1.msra.mxu0 0.0
    %347 = vmatprep.subr.mxu0 0.0
    %348 = vmatpush1.msra.mxu0 0.0
    %349 = vmatprep.subr.mxu0 0.0
    %350 = vmatpush1.msra.mxu0 0.0
    %351 = vmatprep.subr.mxu0 0.0
    %352 = vmatpush1.msra.mxu0 0.0
    %353 = vmatprep.subr.mxu0 0.0
    %354 = vmatpush1.msra.mxu0 0.0
    %355 = vmatprep.subr.mxu0 0.0
    %356 = vmatpush1.msra.mxu0 0.0
    %357 = vmatprep.subr.mxu0 0.0
    %358 = vmatpush1.msra.mxu0 0.0
    %359 = vmatprep.subr.mxu0 0.0
    %360 = vmatpush1.msra.mxu0 0.0
    %361 = vmatprep.subr.mxu0 0.0
    %362 = vmatpush1.msra.mxu0 0.0
    %363 = vmatprep.subr.mxu0 0.0
    %364 = vmatpush1.msra.mxu0 0.0
    %365 = vmatprep.subr.mxu0 0.0
    %366 = vmatpush1.msra.mxu0 0.0
    %367 = vmatprep.subr.mxu0 0.0
    %368 = vmatpush1.msra.mxu0 0.0
    %369 = vmatprep.mubr.f32.mxu0 0.0
    %v370 = vand.u32 %v49, 4294901760
    %v371 = vsub.f32 %v49, %v370
    %v372 = vand.u32 %v371, 4294901760
    %373 = vmatmul.mubr.f32.gmra.mrb[0].mxu0 %v372
    %v374 = vpop.f32.mrb[0].mxu0
    %v375 = vadd.f32 %v298, %v374
    %v376 = vpop.f32.mrb[0].mxu0
    %377 = vdwg.mxu0
    %378 = vmatprep.subr.mxu0 0.0
    %v379 = vand.u32 %v38, 4294901760
    %v380 = vsub.f32 %v38, %v379
    %v381 = vand.u32 %v380, 4294901760
    %382 = vmatpush1.msra.mxu0 %v381
    %383 = vmatprep.subr.mxu0 0.0
    %v384 = vand.u32 %v39, 4294901760
    %v385 = vsub.f32 %v39, %v384
    %v386 = vand.u32 %v385, 4294901760
    %387 = vmatpush1.msra.mxu0 %v386
    %388 = vmatprep.subr.mxu0 0.0
    %v389 = vand.u32 %v40, 4294901760
    %v390 = vsub.f32 %v40, %v389
    %v391 = vand.u32 %v390, 4294901760
    %392 = vmatpush1.msra.mxu0 %v391
    %393 = vmatprep.subr.mxu0 0.0
    %v394 = vand.u32 %v41, 4294901760
    %v395 = vsub.f32 %v41, %v394
    %v396 = vand.u32 %v395, 4294901760
    %397 = vmatpush1.msra.mxu0 %v396
    %398 = vmatprep.subr.mxu0 0.0
    %399 = vmatpush1.msra.mxu0 0.0
    %400 = vmatprep.subr.mxu0 0.0
    %401 = vmatpush1.msra.mxu0 0.0
    %402 = vmatprep.subr.mxu0 0.0
    %403 = vmatpush1.msra.mxu0 0.0
    %404 = vmatprep.subr.mxu0 0.0
    %405 = vmatpush1.msra.mxu0 0.0
    %406 = vmatprep.subr.mxu0 0.0
    %407 = vmatpush1.msra.mxu0 0.0
    %408 = vmatprep.subr.mxu0 0.0
    %409 = vmatpush1.msra.mxu0 0.0
    %410 = vmatprep.subr.mxu0 0.0
    %411 = vmatpush1.msra.mxu0 0.0
    %412 = vmatprep.subr.mxu0 0.0
    %413 = vmatpush1.msra.mxu0 0.0
    %414 = vmatprep.subr.mxu0 0.0
    %415 = vmatpush1.msra.mxu0 0.0
    %416 = vmatprep.subr.mxu0 0.0
    %417 = vmatpush1.msra.mxu0 0.0
    %418 = vmatprep.subr.mxu0 0.0
    %419 = vmatpush1.msra.mxu0 0.0
    %420 = vmatprep.subr.mxu0 0.0
    %421 = vmatpush1.msra.mxu0 0.0
    %422 = vmatprep.subr.mxu0 0.0
    %423 = vmatpush1.msra.mxu0 0.0
    %424 = vmatprep.subr.mxu0 0.0
    %425 = vmatpush1.msra.mxu0 0.0
    %426 = vmatprep.subr.mxu0 0.0
    %427 = vmatpush1.msra.mxu0 0.0
    %428 = vmatprep.subr.mxu0 0.0
    %429 = vmatpush1.msra.mxu0 0.0
    %430 = vmatprep.subr.mxu0 0.0
    %431 = vmatpush1.msra.mxu0 0.0
    %432 = vmatprep.subr.mxu0 0.0
    %433 = vmatpush1.msra.mxu0 0.0
    %434 = vmatprep.subr.mxu0 0.0
    %435 = vmatpush1.msra.mxu0 0.0
    %436 = vmatprep.subr.mxu0 0.0
    %437 = vmatpush1.msra.mxu0 0.0
    %438 = vmatprep.subr.mxu0 0.0
    %439 = vmatpush1.msra.mxu0 0.0
    %440 = vmatprep.subr.mxu0 0.0
    %441 = vmatpush1.msra.mxu0 0.0
    %442 = vmatprep.subr.mxu0 0.0
    %443 = vmatpush1.msra.mxu0 0.0
    %444 = vmatprep.subr.mxu0 0.0
    %445 = vmatpush1.msra.mxu0 0.0
    %446 = vmatprep.subr.mxu0 0.0
    %447 = vmatpush1.msra.mxu0 0.0
    %448 = vmatprep.subr.mxu0 0.0
    %449 = vmatpush1.msra.mxu0 0.0
    %450 = vmatprep.subr.mxu0 0.0
    %451 = vmatpush1.msra.mxu0 0.0
    %452 = vmatprep.subr.mxu0 0.0
    %453 = vmatpush1.msra.mxu0 0.0
    %454 = vmatprep.mubr.f32.mxu0 0.0
    %v455 = vand.u32 %v49, 4294901760
    %456 = vmatmul.mubr.f32.gmra.mrb[0].mxu0 %v455
    %v457 = vpop.f32.mrb[0].mxu0
    %v458 = vadd.f32 %v375, %v457
    %v459 = vpop.f32.mrb[0].mxu0
    %460 = vdwg.mxu0
    %461 = vmatprep.subr.mxu0 0.0
    %v462 = vand.u32 %v38, 4294901760
    %463 = vmatpush1.msra.mxu0 %v462
    %464 = vmatprep.subr.mxu0 0.0
    %v465 = vand.u32 %v39, 4294901760
    %466 = vmatpush1.msra.mxu0 %v465
    %467 = vmatprep.subr.mxu0 0.0
    %v468 = vand.u32 %v40, 4294901760
    %469 = vmatpush1.msra.mxu0 %v468
    %470 = vmatprep.subr.mxu0 0.0
    %v471 = vand.u32 %v41, 4294901760
    %472 = vmatpush1.msra.mxu0 %v471
    %473 = vmatprep.subr.mxu0 0.0
    %474 = vmatpush1.msra.mxu0 0.0
    %475 = vmatprep.subr.mxu0 0.0
    %476 = vmatpush1.msra.mxu0 0.0
    %477 = vmatprep.subr.mxu0 0.0
    %478 = vmatpush1.msra.mxu0 0.0
    %479 = vmatprep.subr.mxu0 0.0
    %480 = vmatpush1.msra.mxu0 0.0
    %481 = vmatprep.subr.mxu0 0.0
    %482 = vmatpush1.msra.mxu0 0.0
    %483 = vmatprep.subr.mxu0 0.0
    %484 = vmatpush1.msra.mxu0 0.0
    %485 = vmatprep.subr.mxu0 0.0
    %486 = vmatpush1.msra.mxu0 0.0
    %487 = vmatprep.subr.mxu0 0.0
    %488 = vmatpush1.msra.mxu0 0.0
    %489 = vmatprep.subr.mxu0 0.0
    %490 = vmatpush1.msra.mxu0 0.0
    %491 = vmatprep.subr.mxu0 0.0
    %492 = vmatpush1.msra.mxu0 0.0
    %493 = vmatprep.subr.mxu0 0.0
    %494 = vmatpush1.msra.mxu0 0.0
    %495 = vmatprep.subr.mxu0 0.0
    %496 = vmatpush1.msra.mxu0 0.0
    %497 = vmatprep.subr.mxu0 0.0
    %498 = vmatpush1.msra.mxu0 0.0
    %499 = vmatprep.subr.mxu0 0.0
    %500 = vmatpush1.msra.mxu0 0.0
    %501 = vmatprep.subr.mxu0 0.0
    %502 = vmatpush1.msra.mxu0 0.0
    %503 = vmatprep.subr.mxu0 0.0
    %504 = vmatpush1.msra.mxu0 0.0
    %505 = vmatprep.subr.mxu0 0.0
    %506 = vmatpush1.msra.mxu0 0.0
    %507 = vmatprep.subr.mxu0 0.0
    %508 = vmatpush1.msra.mxu0 0.0
    %509 = vmatprep.subr.mxu0 0.0
    %510 = vmatpush1.msra.mxu0 0.0
    %511 = vmatprep.subr.mxu0 0.0
    %512 = vmatpush1.msra.mxu0 0.0
    %513 = vmatprep.subr.mxu0 0.0
    %514 = vmatpush1.msra.mxu0 0.0
    %515 = vmatprep.subr.mxu0 0.0
    %516 = vmatpush1.msra.mxu0 0.0
    %517 = vmatprep.subr.mxu0 0.0
    %518 = vmatpush1.msra.mxu0 0.0
    %519 = vmatprep.subr.mxu0 0.0
    %520 = vmatpush1.msra.mxu0 0.0
    %521 = vmatprep.subr.mxu0 0.0
    %522 = vmatpush1.msra.mxu0 0.0
    %523 = vmatprep.subr.mxu0 0.0
    %524 = vmatpush1.msra.mxu0 0.0
    %525 = vmatprep.subr.mxu0 0.0
    %526 = vmatpush1.msra.mxu0 0.0
    %527 = vmatprep.subr.mxu0 0.0
    %528 = vmatpush1.msra.mxu0 0.0
    %529 = vmatprep.mubr.f32.mxu0 0.0
    %v530 = vand.u32 %v49, 4294901760
    %531 = vmatmul.mubr.f32.gmra.mrb[0].mxu0 %v530
    %v532 = vpop.f32.mrb[0].mxu0
    %v533 = vadd.f32 %v458, %v532
    %v534 = vpop.f32.mrb[0].mxu0
    %535 = vdwg.mxu0
    %vm536 = vcmp.gt.f32.partialorder %v533, 0.0
    %v537 = vmul.f32 %v533, 0.01
    %v538 = vsel %vm536, %v533, %v537
    %v539 = vld [vmem:[#allocation4 + $0x28] sm:$0xff]
    %v540 = vld [vmem:[#allocation4 + $0x30] sm:$0xff]
    %v541 = vld [vmem:[#allocation4 + $0x38] sm:$0xff]
    %v542 = vld [vmem:[#allocation4 + $0x40] sm:$0xff]
    %v543 = vld [vmem:[#allocation4 + $0x48] sm:$0xff]
    %v544 = vld [vmem:[#allocation4 + $0x50] sm:$0xff]
    %v545 = vld [vmem:[#allocation4 + $0x58] sm:$0xff]
    %v546 = vld [vmem:[#allocation4 + $0x60] sm:$0xff]
    %v547 = vld [vmem:[#allocation4 + $0x68] sm:$0x1]
    %v548 = vlaneseq
    %v549 = vshrl.u32 %v548, 7
    %v550 = vsub.s32 0, %v549
    %v551 = vrot.slane %v547, %v550
    %vm552 = vcmask 523264
    %v554 = vsel %vm552, %v538, 0
    %556 = vmatprep.subr.mxu0 0.0
    %v557 = vand.u32 %v539, 4294901760
    %558 = vmatpush1.msra.mxu0 %v557
    %559 = vmatprep.subr.mxu0 0.0
    %v560 = vand.u32 %v540, 4294901760
    %561 = vmatpush1.msra.mxu0 %v560
    %562 = vmatprep.subr.mxu0 0.0
    %v563 = vand.u32 %v541, 4294901760
    %564 = vmatpush1.msra.mxu0 %v563
    %565 = vmatprep.subr.mxu0 0.0
    %v566 = vand.u32 %v542, 4294901760
    %567 = vmatpush1.msra.mxu0 %v566
    %568 = vmatprep.subr.mxu0 0.0
    %v569 = vand.u32 %v543, 4294901760
    %570 = vmatpush1.msra.mxu0 %v569
    %571 = vmatprep.subr.mxu0 0.0
    %v572 = vand.u32 %v544, 4294901760
    %573 = vmatpush1.msra.mxu0 %v572
    %574 = vmatprep.subr.mxu0 0.0
    %v575 = vand.u32 %v545, 4294901760
    %576 = vmatpush1.msra.mxu0 %v575
    %577 = vmatprep.subr.mxu0 0.0
    %v578 = vand.u32 %v546, 4294901760
    %579 = vmatpush1.msra.mxu0 %v578
    %580 = vmatprep.subr.mxu0 0.0
    %581 = vmatpush1.msra.mxu0 0.0
    %582 = vmatprep.subr.mxu0 0.0
    %583 = vmatpush1.msra.mxu0 0.0
    %584 = vmatprep.subr.mxu0 0.0
    %585 = vmatpush1.msra.mxu0 0.0
    %586 = vmatprep.subr.mxu0 0.0
    %587 = vmatpush1.msra.mxu0 0.0
    %588 = vmatprep.subr.mxu0 0.0
    %589 = vmatpush1.msra.mxu0 0.0
    %590 = vmatprep.subr.mxu0 0.0
    %591 = vmatpush1.msra.mxu0 0.0
    %592 = vmatprep.subr.mxu0 0.0
    %593 = vmatpush1.msra.mxu0 0.0
    %594 = vmatprep.subr.mxu0 0.0
    %595 = vmatpush1.msra.mxu0 0.0
    %596 = vmatprep.subr.mxu0 0.0
    %597 = vmatpush1.msra.mxu0 0.0
    %598 = vmatprep.subr.mxu0 0.0
    %599 = vmatpush1.msra.mxu0 0.0
    %600 = vmatprep.subr.mxu0 0.0
    %601 = vmatpush1.msra.mxu0 0.0
    %602 = vmatprep.subr.mxu0 0.0
    %603 = vmatpush1.msra.mxu0 0.0
    %604 = vmatprep.subr.mxu0 0.0
    %605 = vmatpush1.msra.mxu0 0.0
    %606 = vmatprep.subr.mxu0 0.0
    %607 = vmatpush1.msra.mxu0 0.0
    %608 = vmatprep.subr.mxu0 0.0
    %609 = vmatpush1.msra.mxu0 0.0
    %610 = vmatprep.subr.mxu0 0.0
    %611 = vmatpush1.msra.mxu0 0.0
    %612 = vmatprep.subr.mxu0 0.0
    %613 = vmatpush1.msra.mxu0 0.0
    %614 = vmatprep.subr.mxu0 0.0
    %615 = vmatpush1.msra.mxu0 0.0
    %616 = vmatprep.subr.mxu0 0.0
    %617 = vmatpush1.msra.mxu0 0.0
    %618 = vmatprep.subr.mxu0 0.0
    %619 = vmatpush1.msra.mxu0 0.0
    %620 = vmatprep.subr.mxu0 0.0
    %621 = vmatpush1.msra.mxu0 0.0
    %622 = vmatprep.subr.mxu0 0.0
    %623 = vmatpush1.msra.mxu0 0.0
    %624 = vmatprep.subr.mxu0 0.0
    %625 = vmatpush1.msra.mxu0 0.0
    %626 = vmatprep.subr.mxu0 0.0
    %627 = vmatpush1.msra.mxu0 0.0
    %628 = vmatprep.mubr.f32.mxu0 0.0
    %v629 = vand.u32 %v554, 4294901760
    %v630 = vsub.f32 %v554, %v629
    %v631 = vand.u32 %v630, 4294901760
    %v632 = vsub.f32 %v630, %v631
    %v633 = vand.u32 %v632, 4294901760
    %634 = vmatmul.mubr.f32.gmra.mrb[0].mxu0 %v633
    %v635 = vpop.f32.mrb[0].mxu0
    %v636 = vadd.f32 %v551, %v635
    %v637 = vpop.f32.mrb[0].mxu0
    %638 = vdwg.mxu0
    %639 = vmatprep.subr.mxu0 0.0
    %v640 = vand.u32 %v539, 4294901760
    %v641 = vsub.f32 %v539, %v640
    %v642 = vand.u32 %v641, 4294901760
    %v643 = vsub.f32 %v641, %v642
    %v644 = vand.u32 %v643, 4294901760
    %645 = vmatpush1.msra.mxu0 %v644
    %646 = vmatprep.subr.mxu0 0.0
    %v647 = vand.u32 %v540, 4294901760
    %v648 = vsub.f32 %v540, %v647
    %v649 = vand.u32 %v648, 4294901760
    %v650 = vsub.f32 %v648, %v649
    %v651 = vand.u32 %v650, 4294901760
    %652 = vmatpush1.msra.mxu0 %v651
    %653 = vmatprep.subr.mxu0 0.0
    %v654 = vand.u32 %v541, 4294901760
    %v655 = vsub.f32 %v541, %v654
    %v656 = vand.u32 %v655, 4294901760
    %v657 = vsub.f32 %v655, %v656
    %v658 = vand.u32 %v657, 4294901760
    %659 = vmatpush1.msra.mxu0 %v658
    %660 = vmatprep.subr.mxu0 0.0
    %v661 = vand.u32 %v542, 4294901760
    %v662 = vsub.f32 %v542, %v661
    %v663 = vand.u32 %v662, 4294901760
    %v664 = vsub.f32 %v662, %v663
    %v665 = vand.u32 %v664, 4294901760
    %666 = vmatpush1.msra.mxu0 %v665
    %667 = vmatprep.subr.mxu0 0.0
    %v668 = vand.u32 %v543, 4294901760
    %v669 = vsub.f32 %v543, %v668
    %v670 = vand.u32 %v669, 4294901760
    %v671 = vsub.f32 %v669, %v670
    %v672 = vand.u32 %v671, 4294901760
    %673 = vmatpush1.msra.mxu0 %v672
    %674 = vmatprep.subr.mxu0 0.0
    %v675 = vand.u32 %v544, 4294901760
    %v676 = vsub.f32 %v544, %v675
    %v677 = vand.u32 %v676, 4294901760
    %v678 = vsub.f32 %v676, %v677
    %v679 = vand.u32 %v678, 4294901760
    %680 = vmatpush1.msra.mxu0 %v679
    %681 = vmatprep.subr.mxu0 0.0
    %v682 = vand.u32 %v545, 4294901760
    %v683 = vsub.f32 %v545, %v682
    %v684 = vand.u32 %v683, 4294901760
    %v685 = vsub.f32 %v683, %v684
    %v686 = vand.u32 %v685, 4294901760
    %687 = vmatpush1.msra.mxu0 %v686
    %688 = vmatprep.subr.mxu0 0.0
    %v689 = vand.u32 %v546, 4294901760
    %v690 = vsub.f32 %v546, %v689
    %v691 = vand.u32 %v690, 4294901760
    %v692 = vsub.f32 %v690, %v691
    %v693 = vand.u32 %v692, 4294901760
    %694 = vmatpush1.msra.mxu0 %v693
    %695 = vmatprep.subr.mxu0 0.0
    %696 = vmatpush1.msra.mxu0 0.0
    %697 = vmatprep.subr.mxu0 0.0
    %698 = vmatpush1.msra.mxu0 0.0
    %699 = vmatprep.subr.mxu0 0.0
    %700 = vmatpush1.msra.mxu0 0.0
    %701 = vmatprep.subr.mxu0 0.0
    %702 = vmatpush1.msra.mxu0 0.0
    %703 = vmatprep.subr.mxu0 0.0
    %704 = vmatpush1.msra.mxu0 0.0
    %705 = vmatprep.subr.mxu0 0.0
    %706 = vmatpush1.msra.mxu0 0.0
    %707 = vmatprep.subr.mxu0 0.0
    %708 = vmatpush1.msra.mxu0 0.0
    %709 = vmatprep.subr.mxu0 0.0
    %710 = vmatpush1.msra.mxu0 0.0
    %711 = vmatprep.subr.mxu0 0.0
    %712 = vmatpush1.msra.mxu0 0.0
    %713 = vmatprep.subr.mxu0 0.0
    %714 = vmatpush1.msra.mxu0 0.0
    %715 = vmatprep.subr.mxu0 0.0
    %716 = vmatpush1.msra.mxu0 0.0
    %717 = vmatprep.subr.mxu0 0.0
    %718 = vmatpush1.msra.mxu0 0.0
    %719 = vmatprep.subr.mxu0 0.0
    %720 = vmatpush1.msra.mxu0 0.0
    %721 = vmatprep.subr.mxu0 0.0
    %722 = vmatpush1.msra.mxu0 0.0
    %723 = vmatprep.subr.mxu0 0.0
    %724 = vmatpush1.msra.mxu0 0.0
    %725 = vmatprep.subr.mxu0 0.0
    %726 = vmatpush1.msra.mxu0 0.0
    %727 = vmatprep.subr.mxu0 0.0
    %728 = vmatpush1.msra.mxu0 0.0
    %729 = vmatprep.subr.mxu0 0.0
    %730 = vmatpush1.msra.mxu0 0.0
    %731 = vmatprep.subr.mxu0 0.0
    %732 = vmatpush1.msra.mxu0 0.0
    %733 = vmatprep.subr.mxu0 0.0
    %734 = vmatpush1.msra.mxu0 0.0
    %735 = vmatprep.subr.mxu0 0.0
    %736 = vmatpush1.msra.mxu0 0.0
    %737 = vmatprep.subr.mxu0 0.0
    %738 = vmatpush1.msra.mxu0 0.0
    %739 = vmatprep.subr.mxu0 0.0
    %740 = vmatpush1.msra.mxu0 0.0
    %741 = vmatprep.subr.mxu0 0.0
    %742 = vmatpush1.msra.mxu0 0.0
    %743 = vmatprep.mubr.f32.mxu0 0.0
    %v744 = vand.u32 %v554, 4294901760
    %745 = vmatmul.mubr.f32.gmra.mrb[0].mxu0 %v744
    %v746 = vpop.f32.mrb[0].mxu0
    %v747 = vadd.f32 %v636, %v746
    %v748 = vpop.f32.mrb[0].mxu0
    %749 = vdwg.mxu0
    %750 = vmatprep.subr.mxu0 0.0
    %v751 = vand.u32 %v539, 4294901760
    %v752 = vsub.f32 %v539, %v751
    %753 = vmatpush1.msra.mxu0 %v752
    %754 = vmatprep.subr.mxu0 0.0
    %v755 = vand.u32 %v540, 4294901760
    %v756 = vsub.f32 %v540, %v755
    %757 = vmatpush1.msra.mxu0 %v756
    %758 = vmatprep.subr.mxu0 0.0
    %v759 = vand.u32 %v541, 4294901760
    %v760 = vsub.f32 %v541, %v759
    %761 = vmatpush1.msra.mxu0 %v760
    %762 = vmatprep.subr.mxu0 0.0
    %v763 = vand.u32 %v542, 4294901760
    %v764 = vsub.f32 %v542, %v763
    %765 = vmatpush1.msra.mxu0 %v764
    %766 = vmatprep.subr.mxu0 0.0
    %v767 = vand.u32 %v543, 4294901760
    %v768 = vsub.f32 %v543, %v767
    %769 = vmatpush1.msra.mxu0 %v768
    %770 = vmatprep.subr.mxu0 0.0
    %v771 = vand.u32 %v544, 4294901760
    %v772 = vsub.f32 %v544, %v771
    %773 = vmatpush1.msra.mxu0 %v772
    %774 = vmatprep.subr.mxu0 0.0
    %v775 = vand.u32 %v545, 4294901760
    %v776 = vsub.f32 %v545, %v775
    %777 = vmatpush1.msra.mxu0 %v776
    %778 = vmatprep.subr.mxu0 0.0
    %v779 = vand.u32 %v546, 4294901760
    %v780 = vsub.f32 %v546, %v779
    %781 = vmatpush1.msra.mxu0 %v780
    %782 = vmatprep.subr.mxu0 0.0
    %783 = vmatpush1.msra.mxu0 0.0
    %784 = vmatprep.subr.mxu0 0.0
    %785 = vmatpush1.msra.mxu0 0.0
    %786 = vmatprep.subr.mxu0 0.0
    %787 = vmatpush1.msra.mxu0 0.0
    %788 = vmatprep.subr.mxu0 0.0
    %789 = vmatpush1.msra.mxu0 0.0
    %790 = vmatprep.subr.mxu0 0.0
    %791 = vmatpush1.msra.mxu0 0.0
    %792 = vmatprep.subr.mxu0 0.0
    %793 = vmatpush1.msra.mxu0 0.0
    %794 = vmatprep.subr.mxu0 0.0
    %795 = vmatpush1.msra.mxu0 0.0
    %796 = vmatprep.subr.mxu0 0.0
    %797 = vmatpush1.msra.mxu0 0.0
    %798 = vmatprep.subr.mxu0 0.0
    %799 = vmatpush1.msra.mxu0 0.0
    %800 = vmatprep.subr.mxu0 0.0
    %801 = vmatpush1.msra.mxu0 0.0
    %802 = vmatprep.subr.mxu0 0.0
    %803 = vmatpush1.msra.mxu0 0.0
    %804 = vmatprep.subr.mxu0 0.0
    %805 = vmatpush1.msra.mxu0 0.0
    %806 = vmatprep.subr.mxu0 0.0
    %807 = vmatpush1.msra.mxu0 0.0
    %808 = vmatprep.subr.mxu0 0.0
    %809 = vmatpush1.msra.mxu0 0.0
    %810 = vmatprep.subr.mxu0 0.0
    %811 = vmatpush1.msra.mxu0 0.0
    %812 = vmatprep.subr.mxu0 0.0
    %813 = vmatpush1.msra.mxu0 0.0
    %814 = vmatprep.subr.mxu0 0.0
    %815 = vmatpush1.msra.mxu0 0.0
    %816 = vmatprep.subr.mxu0 0.0
    %817 = vmatpush1.msra.mxu0 0.0
    %818 = vmatprep.subr.mxu0 0.0
    %819 = vmatpush1.msra.mxu0 0.0
    %820 = vmatprep.subr.mxu0 0.0
    %821 = vmatpush1.msra.mxu0 0.0
    %822 = vmatprep.subr.mxu0 0.0
    %823 = vmatpush1.msra.mxu0 0.0
    %824 = vmatprep.subr.mxu0 0.0
    %825 = vmatpush1.msra.mxu0 0.0
    %826 = vmatprep.subr.mxu0 0.0
    %827 = vmatpush1.msra.mxu0 0.0
    %828 = vmatprep.subr.mxu0 0.0
    %829 = vmatpush1.msra.mxu0 0.0
    %830 = vmatprep.mubr.f32.mxu0 0.0
    %v831 = vand.u32 %v554, 4294901760
    %v832 = vsub.f32 %v554, %v831
    %833 = vmatmul.mubr.f32.gmra.mrb[0].mxu0 %v832
    %v834 = vpop.f32.mrb[0].mxu0
    %v835 = vadd.f32 %v747, %v834
    %v836 = vpop.f32.mrb[0].mxu0
    %837 = vdwg.mxu0
    %838 = vmatprep.subr.mxu0 0.0
    %v839 = vand.u32 %v539, 4294901760
    %840 = vmatpush1.msra.mxu0 %v839
    %841 = vmatprep.subr.mxu0 0.0
    %v842 = vand.u32 %v540, 4294901760
    %843 = vmatpush1.msra.mxu0 %v842
    %844 = vmatprep.subr.mxu0 0.0
    %v845 = vand.u32 %v541, 4294901760
    %846 = vmatpush1.msra.mxu0 %v845
    %847 = vmatprep.subr.mxu0 0.0
    %v848 = vand.u32 %v542, 4294901760
    %849 = vmatpush1.msra.mxu0 %v848
    %850 = vmatprep.subr.mxu0 0.0
    %v851 = vand.u32 %v543, 4294901760
    %852 = vmatpush1.msra.mxu0 %v851
    %853 = vmatprep.subr.mxu0 0.0
    %v854 = vand.u32 %v544, 4294901760
    %855 = vmatpush1.msra.mxu0 %v854
    %856 = vmatprep.subr.mxu0 0.0
    %v857 = vand.u32 %v545, 4294901760
    %858 = vmatpush1.msra.mxu0 %v857
    %859 = vmatprep.subr.mxu0 0.0
    %v860 = vand.u32 %v546, 4294901760
    %861 = vmatpush1.msra.mxu0 %v860
    %862 = vmatprep.subr.mxu0 0.0
    %863 = vmatpush1.msra.mxu0 0.0
    %864 = vmatprep.subr.mxu0 0.0
    %865 = vmatpush1.msra.mxu0 0.0
    %866 = vmatprep.subr.mxu0 0.0
    %867 = vmatpush1.msra.mxu0 0.0
    %868 = vmatprep.subr.mxu0 0.0
    %869 = vmatpush1.msra.mxu0 0.0
    %870 = vmatprep.subr.mxu0 0.0
    %871 = vmatpush1.msra.mxu0 0.0
    %872 = vmatprep.subr.mxu0 0.0
    %873 = vmatpush1.msra.mxu0 0.0
    %874 = vmatprep.subr.mxu0 0.0
    %875 = vmatpush1.msra.mxu0 0.0
    %876 = vmatprep.subr.mxu0 0.0
    %877 = vmatpush1.msra.mxu0 0.0
    %878 = vmatprep.subr.mxu0 0.0
    %879 = vmatpush1.msra.mxu0 0.0
    %880 = vmatprep.subr.mxu0 0.0
    %881 = vmatpush1.msra.mxu0 0.0
    %882 = vmatprep.subr.mxu0 0.0
    %883 = vmatpush1.msra.mxu0 0.0
    %884 = vmatprep.subr.mxu0 0.0
    %885 = vmatpush1.msra.mxu0 0.0
    %886 = vmatprep.subr.mxu0 0.0
    %887 = vmatpush1.msra.mxu0 0.0
    %888 = vmatprep.subr.mxu0 0.0
    %889 = vmatpush1.msra.mxu0 0.0
    %890 = vmatprep.subr.mxu0 0.0
    %891 = vmatpush1.msra.mxu0 0.0
    %892 = vmatprep.subr.mxu0 0.0
    %893 = vmatpush1.msra.mxu0 0.0
    %894 = vmatprep.subr.mxu0 0.0
    %895 = vmatpush1.msra.mxu0 0.0
    %896 = vmatprep.subr.mxu0 0.0
    %897 = vmatpush1.msra.mxu0 0.0
    %898 = vmatprep.subr.mxu0 0.0
    %899 = vmatpush1.msra.mxu0 0.0
    %900 = vmatprep.subr.mxu0 0.0
    %901 = vmatpush1.msra.mxu0 0.0
    %902 = vmatprep.subr.mxu0 0.0
    %903 = vmatpush1.msra.mxu0 0.0
    %904 = vmatprep.subr.mxu0 0.0
    %905 = vmatpush1.msra.mxu0 0.0
    %906 = vmatprep.subr.mxu0 0.0
    %907 = vmatpush1.msra.mxu0 0.0
    %908 = vmatprep.subr.mxu0 0.0
    %909 = vmatpush1.msra.mxu0 0.0
    %910 = vmatprep.mubr.f32.mxu0 0.0
    %v911 = vand.u32 %v554, 4294901760
    %v912 = vsub.f32 %v554, %v911
    %v913 = vand.u32 %v912, 4294901760
    %914 = vmatmul.mubr.f32.gmra.mrb[0].mxu0 %v913
    %v915 = vpop.f32.mrb[0].mxu0
    %v916 = vadd.f32 %v835, %v915
    %v917 = vpop.f32.mrb[0].mxu0
    %918 = vdwg.mxu0
    %919 = vmatprep.subr.mxu0 0.0
    %v920 = vand.u32 %v539, 4294901760
    %v921 = vsub.f32 %v539, %v920
    %v922 = vand.u32 %v921, 4294901760
    %923 = vmatpush1.msra.mxu0 %v922
    %924 = vmatprep.subr.mxu0 0.0
    %v925 = vand.u32 %v540, 4294901760
    %v926 = vsub.f32 %v540, %v925
    %v927 = vand.u32 %v926, 4294901760
    %928 = vmatpush1.msra.mxu0 %v927
    %929 = vmatprep.subr.mxu0 0.0
    %v930 = vand.u32 %v541, 4294901760
    %v931 = vsub.f32 %v541, %v930
    %v932 = vand.u32 %v931, 4294901760
    %933 = vmatpush1.msra.mxu0 %v932
    %934 = vmatprep.subr.mxu0 0.0
    %v935 = vand.u32 %v542, 4294901760
    %v936 = vsub.f32 %v542, %v935
    %v937 = vand.u32 %v936, 4294901760
    %938 = vmatpush1.msra.mxu0 %v937
    %939 = vmatprep.subr.mxu0 0.0
    %v940 = vand.u32 %v543, 4294901760
    %v941 = vsub.f32 %v543, %v940
    %v942 = vand.u32 %v941, 4294901760
    %943 = vmatpush1.msra.mxu0 %v942
    %944 = vmatprep.subr.mxu0 0.0
    %v945 = vand.u32 %v544, 4294901760
    %v946 = vsub.f32 %v544, %v945
    %v947 = vand.u32 %v946, 4294901760
    %948 = vmatpush1.msra.mxu0 %v947
    %949 = vmatprep.subr.mxu0 0.0
    %v950 = vand.u32 %v545, 4294901760
    %v951 = vsub.f32 %v545, %v950
    %v952 = vand.u32 %v951, 4294901760
    %953 = vmatpush1.msra.mxu0 %v952
    %954 = vmatprep.subr.mxu0 0.0
    %v955 = vand.u32 %v546, 4294901760
    %v956 = vsub.f32 %v546, %v955
    %v957 = vand.u32 %v956, 4294901760
    %958 = vmatpush1.msra.mxu0 %v957
    %959 = vmatprep.subr.mxu0 0.0
    %960 = vmatpush1.msra.mxu0 0.0
    %961 = vmatprep.subr.mxu0 0.0
    %962 = vmatpush1.msra.mxu0 0.0
    %963 = vmatprep.subr.mxu0 0.0
    %964 = vmatpush1.msra.mxu0 0.0
    %965 = vmatprep.subr.mxu0 0.0
    %966 = vmatpush1.msra.mxu0 0.0
    %967 = vmatprep.subr.mxu0 0.0
    %968 = vmatpush1.msra.mxu0 0.0
    %969 = vmatprep.subr.mxu0 0.0
    %970 = vmatpush1.msra.mxu0 0.0
    %971 = vmatprep.subr.mxu0 0.0
    %972 = vmatpush1.msra.mxu0 0.0
    %973 = vmatprep.subr.mxu0 0.0
    %974 = vmatpush1.msra.mxu0 0.0
    %975 = vmatprep.subr.mxu0 0.0
    %976 = vmatpush1.msra.mxu0 0.0
    %977 = vmatprep.subr.mxu0 0.0
    %978 = vmatpush1.msra.mxu0 0.0
    %979 = vmatprep.subr.mxu0 0.0
    %980 = vmatpush1.msra.mxu0 0.0
    %981 = vmatprep.subr.mxu0 0.0
    %982 = vmatpush1.msra.mxu0 0.0
    %983 = vmatprep.subr.mxu0 0.0
    %984 = vmatpush1.msra.mxu0 0.0
    %985 = vmatprep.subr.mxu0 0.0
    %986 = vmatpush1.msra.mxu0 0.0
    %987 = vmatprep.subr.mxu0 0.0
    %988 = vmatpush1.msra.mxu0 0.0
    %989 = vmatprep.subr.mxu0 0.0
    %990 = vmatpush1.msra.mxu0 0.0
    %991 = vmatprep.subr.mxu0 0.0
    %992 = vmatpush1.msra.mxu0 0.0
    %993 = vmatprep.subr.mxu0 0.0
    %994 = vmatpush1.msra.mxu0 0.0
    %995 = vmatprep.subr.mxu0 0.0
    %996 = vmatpush1.msra.mxu0 0.0
    %997 = vmatprep.subr.mxu0 0.0
    %998 = vmatpush1.msra.mxu0 0.0
    %999 = vmatprep.subr.mxu0 0.0
    %1000 = vmatpush1.msra.mxu0 0.0
    %1001 = vmatprep.subr.mxu0 0.0
    %1002 = vmatpush1.msra.mxu0 0.0
    %1003 = vmatprep.subr.mxu0 0.0
    %1004 = vmatpush1.msra.mxu0 0.0
    %1005 = vmatprep.subr.mxu0 0.0
    %1006 = vmatpush1.msra.mxu0 0.0
    %1007 = vmatprep.mubr.f32.mxu0 0.0
    %v1008 = vand.u32 %v554, 4294901760
    %1009 = vmatmul.mubr.f32.gmra.mrb[0].mxu0 %v1008
    %v1010 = vpop.f32.mrb[0].mxu0
    %v1011 = vadd.f32 %v916, %v1010
    %v1012 = vpop.f32.mrb[0].mxu0
    %1013 = vdwg.mxu0
    %1014 = vmatprep.subr.mxu0 0.0
    %v1015 = vand.u32 %v539, 4294901760
    %1016 = vmatpush1.msra.mxu0 %v1015
    %1017 = vmatprep.subr.mxu0 0.0
    %v1018 = vand.u32 %v540, 4294901760
    %1019 = vmatpush1.msra.mxu0 %v1018
    %1020 = vmatprep.subr.mxu0 0.0
    %v1021 = vand.u32 %v541, 4294901760
    %1022 = vmatpush1.msra.mxu0 %v1021
    %1023 = vmatprep.subr.mxu0 0.0
    %v1024 = vand.u32 %v542, 4294901760
    %1025 = vmatpush1.msra.mxu0 %v1024
    %1026 = vmatprep.subr.mxu0 0.0
    %v1027 = vand.u32 %v543, 4294901760
    %1028 = vmatpush1.msra.mxu0 %v1027
    %1029 = vmatprep.subr.mxu0 0.0
    %v1030 = vand.u32 %v544, 4294901760
    %1031 = vmatpush1.msra.mxu0 %v1030
    %1032 = vmatprep.subr.mxu0 0.0
    %v1033 = vand.u32 %v545, 4294901760
    %1034 = vmatpush1.msra.mxu0 %v1033
    %1035 = vmatprep.subr.mxu0 0.0
    %v1036 = vand.u32 %v546, 4294901760
    %1037 = vmatpush1.msra.mxu0 %v1036
    %1038 = vmatprep.subr.mxu0 0.0
    %1039 = vmatpush1.msra.mxu0 0.0
    %1040 = vmatprep.subr.mxu0 0.0
    %1041 = vmatpush1.msra.mxu0 0.0
    %1042 = vmatprep.subr.mxu0 0.0
    %1043 = vmatpush1.msra.mxu0 0.0
    %1044 = vmatprep.subr.mxu0 0.0
    %1045 = vmatpush1.msra.mxu0 0.0
    %1046 = vmatprep.subr.mxu0 0.0
    %1047 = vmatpush1.msra.mxu0 0.0
    %1048 = vmatprep.subr.mxu0 0.0
    %1049 = vmatpush1.msra.mxu0 0.0
    %1050 = vmatprep.subr.mxu0 0.0
    %1051 = vmatpush1.msra.mxu0 0.0
    %1052 = vmatprep.subr.mxu0 0.0
    %1053 = vmatpush1.msra.mxu0 0.0
    %1054 = vmatprep.subr.mxu0 0.0
    %1055 = vmatpush1.msra.mxu0 0.0
    %1056 = vmatprep.subr.mxu0 0.0
    %1057 = vmatpush1.msra.mxu0 0.0
    %1058 = vmatprep.subr.mxu0 0.0
    %1059 = vmatpush1.msra.mxu0 0.0
    %1060 = vmatprep.subr.mxu0 0.0
    %1061 = vmatpush1.msra.mxu0 0.0
    %1062 = vmatprep.subr.mxu0 0.0
    %1063 = vmatpush1.msra.mxu0 0.0
    %1064 = vmatprep.subr.mxu0 0.0
    %1065 = vmatpush1.msra.mxu0 0.0
    %1066 = vmatprep.subr.mxu0 0.0
    %1067 = vmatpush1.msra.mxu0 0.0
    %1068 = vmatprep.subr.mxu0 0.0
    %1069 = vmatpush1.msra.mxu0 0.0
    %1070 = vmatprep.subr.mxu0 0.0
    %1071 = vmatpush1.msra.mxu0 0.0
    %1072 = vmatprep.subr.mxu0 0.0
    %1073 = vmatpush1.msra.mxu0 0.0
    %1074 = vmatprep.subr.mxu0 0.0
    %1075 = vmatpush1.msra.mxu0 0.0
    %1076 = vmatprep.subr.mxu0 0.0
    %1077 = vmatpush1.msra.mxu0 0.0
    %1078 = vmatprep.subr.mxu0 0.0
    %1079 = vmatpush1.msra.mxu0 0.0
    %1080 = vmatprep.subr.mxu0 0.0
    %1081 = vmatpush1.msra.mxu0 0.0
    %1082 = vmatprep.subr.mxu0 0.0
    %1083 = vmatpush1.msra.mxu0 0.0
    %1084 = vmatprep.subr.mxu0 0.0
    %1085 = vmatpush1.msra.mxu0 0.0
    %1086 = vmatprep.mubr.f32.mxu0 0.0
    %v1087 = vand.u32 %v554, 4294901760
    %1088 = vmatmul.mubr.f32.gmra.mrb[0].mxu0 %v1087
    %v1089 = vpop.f32.mrb[0].mxu0
    %v1090 = vadd.f32 %v1011, %v1089
    %v1091 = vpop.f32.mrb[0].mxu0
    %1092 = vdwg.mxu0
    %vm1093 = vcmp.gt.f32.partialorder %v1090, 0.0
    %v1094 = vmul.f32 %v1090, 0.01
    %v1095 = vsel %vm1093, %v1090, %v1094
    %v1096 = vld [vmem:[#allocation4 + $0x70] sm:$0x1]
    %v1097 = vlaneseq
    %v1098 = vshrl.u32 %v1097, 7
    %v1099 = vsub.s32 0, %v1098
    %v1100 = vrot.slane %v1096, %v1099
    %v1101 = vmul.f32 %v1095, %v1100
    %v1102 = vsel %vm47, %v1101, 0.0
    %1103 = vadd.xlane.f32.xlu0 %v1102
    %v1104 = vpop.xlane.xlu0 %1103
    %vm1105 = vcmask 7168
    %1106 = vst.msk [vmem:[%s2] sm:$0xff] %vm1105, %v1104
    // Predicated region
    $region18: #{tpu_custom_call.1} parent=1 // pred_check
      _
    $region19: #{tpu_custom_call.1} parent=1 // pred_check_branch
      %1108 = sbr.rel (0) target = $region21
    $region20: #{tpu_custom_call.1} parent=1 // pred_region
      _
    $region21: #{tpu_custom_call.1} parent=1 // pred_fallthru
      _
    // Predicated region
    $region22: #{tpu_custom_call.1} parent=1 // pred_check
      _
    $region23: #{tpu_custom_call.1} parent=1 // pred_check_branch
      %1110 = sbr.rel (0) target = $region25
    $region24: #{tpu_custom_call.1} parent=1 // pred_region
      _
    $region25: #{tpu_custom_call.1} parent=1 // pred_fallthru
      _
    %1111 = vsyncpa [#allocation3], 1
    %1112 = vsyncpa [#allocation5], 1

</llo_original>
